<compile_context>
chip_gen: v6e
topology: v6e:2x2x1
jax: 0.10.0
libtpu: 0.0.40
codegen_flags: <defaults>
</compile_context>

<pallas_src>
import functools

import jax
import jax.numpy as jnp
from jax.experimental import pallas as pl
from jax.experimental.pallas import tpu as pltpu


def _round_up(x: int, m: int) -> int:
    return ((x + m - 1) // m) * m


def _cossim_kernel_2d(x1_ref, x2t_ref, inv1_ref, inv2_ref, o_ref, *, precision):
    # Whole contraction in a single MXU dot; normalization + affine folded
    # into one output scaling pass.
    sim = jnp.dot(x1_ref[...], x2t_ref[...],
                  preferred_element_type=jnp.float32, precision=precision)
    inv1h = inv1_ref[...] * 0.5                         # (tm, 1), folds the /2
    o_ref[...] = (sim * inv1h * inv2_ref[...] + 0.5).astype(o_ref.dtype)


def _cossim_kernel_3d(x1_ref, x2t_ref, inv1_ref, inv2_ref, o_ref, *scratch,
                      precision):
    # Large-D path: k is the contraction grid axis. For f32 outputs the
    # resident output tile itself is the accumulator; otherwise use the f32
    # VMEM scratch passed in scratch_shapes.
    acc_ref = scratch[0] if scratch else o_ref
    k = pl.program_id(2)

    @pl.when(k == 0)
    def _init():
        acc_ref[...] = jnp.zeros_like(acc_ref)

    acc_ref[...] += jnp.dot(x1_ref[...], x2t_ref[...],
                            preferred_element_type=jnp.float32,
                            precision=precision)

    @pl.when(k == pl.num_programs(2) - 1)
    def _finalize():
        inv1h = inv1_ref[...] * 0.5
        o_ref[...] = (acc_ref[...] * inv1h * inv2_ref[...] + 0.5).astype(
            o_ref.dtype)


def cosine_similarity_matrix(x1: jax.Array, x2: jax.Array,
                             eps: float = 1e-8,
                             precision=None) -> jax.Array:
    """x1: [N1, D], x2: [N2, D]  ->  [N1, N2] with (cos_sim + 1) / 2."""
    assert x1.ndim == 2 and x2.ndim == 2 and x1.shape[1] == x2.shape[1]
    n1, d = x1.shape
    n2, _ = x2.shape

    out_dtype = jnp.promote_types(x1.dtype, x2.dtype)
    x1 = x1.astype(out_dtype)
    x2 = x2.astype(out_dtype)

    # f32 operands: full-precision MXU passes to track the f32 reference.
    # bf16 operands (or an explicit `precision`) take the fast path.
    if precision is None:
        precision = (jax.lax.Precision.HIGHEST if out_dtype == jnp.float32
                     else jax.lax.Precision.DEFAULT)

    # Row norms computed ONCE here (from unpadded data), not per k-step.
    # torch: x / clamp(norm, min=eps)  <=>  x * rsqrt(max(sumsq, eps**2))
    x1f = x1.astype(jnp.float32)
    x2f = x2.astype(jnp.float32)
    inv1 = jax.lax.rsqrt(jnp.maximum(
        jnp.sum(x1f * x1f, axis=1, keepdims=True), eps * eps))        # (n1, 1)
    inv2 = jax.lax.rsqrt(jnp.maximum(
        jnp.sum(x2f * x2f, axis=1, keepdims=True), eps * eps)).T      # (1, n2)

    itemsize = jnp.dtype(out_dtype).itemsize
    sub = max(8, 32 // itemsize)           # sublane rounding: f32 -> 8, bf16 -> 16

    tm = min(512, _round_up(n1, sub))
    tn = min(512, _round_up(n2, 128))
    n1p = _round_up(n1, tm)
    n2p = _round_up(n2, tn)

    # Give both v7x TensorCores work when the natural grid is a single tile.
    if (n1p // tm) * (n2p // tn) == 1 and tm >= 2 * sub:
        tm = _round_up((tm + 1) // 2, sub)
        n1p = _round_up(n1, tm)

    # Contraction axis: flatten it whenever padded D fits one tile.
    dk = _round_up(d, 128)
    flat_k = dk <= 2048
    tk = dk if flat_k else 1024
    dp = _round_up(d, tk)

    x1p = jnp.pad(x1, ((0, n1p - n1), (0, dp - d)))
    x2tp = jnp.pad(x2, ((0, n2p - n2), (0, dp - d))).T               # (dp, n2p)
    inv1p = jnp.pad(inv1, ((0, n1p - n1), (0, 0)))
    inv2p = jnp.pad(inv2, ((0, 0), (0, n2p - n2)))

    if flat_k:
        grid = (n1p // tm, n2p // tn)
        in_specs = [
            pl.BlockSpec((tm, tk), lambda i, j: (i, 0)),
            pl.BlockSpec((tk, tn), lambda i, j: (0, j)),
            pl.BlockSpec((tm, 1), lambda i, j: (i, 0)),
            pl.BlockSpec((1, tn), lambda i, j: (0, j)),
        ]
        out_specs = pl.BlockSpec((tm, tn), lambda i, j: (i, j))
        scratch_shapes = []
        kernel = functools.partial(_cossim_kernel_2d, precision=precision)
        dim_sem = ("parallel", "parallel")
    else:
        grid = (n1p // tm, n2p // tn, dp // tk)
        in_specs = [
            pl.BlockSpec((tm, tk), lambda i, j, k: (i, k)),
            pl.BlockSpec((tk, tn), lambda i, j, k: (k, j)),
            pl.BlockSpec((tm, 1), lambda i, j, k: (i, 0)),
            pl.BlockSpec((1, tn), lambda i, j, k: (0, j)),
        ]
        out_specs = pl.BlockSpec((tm, tn), lambda i, j, k: (i, j))
        # f32 output: accumulate directly into the resident o_ref (no scratch).
        scratch_shapes = ([] if out_dtype == jnp.float32
                          else [pltpu.VMEM((tm, tn), jnp.float32)])
        kernel = functools.partial(_cossim_kernel_3d, precision=precision)
        dim_sem = ("parallel", "parallel", "arbitrary")

    cost = pl.CostEstimate(
        flops=2 * n1p * n2p * dp,
        transcendentals=0,
        bytes_accessed=(n1p * dp * (n2p // tn) + n2p * dp * (n1p // tm))
                       * itemsize + n1p * n2p * itemsize,
    )

    out = pl.pallas_call(
        kernel,
        out_shape=jax.ShapeDtypeStruct((n1p, n2p), out_dtype),
        grid_spec=pltpu.PrefetchScalarGridSpec(
            num_scalar_prefetch=0,
            grid=grid,
            in_specs=in_specs,
            out_specs=out_specs,
            scratch_shapes=scratch_shapes,
        ),
        compiler_params=pltpu.CompilerParams(
            dimension_semantics=dim_sem,
            # 48 MiB scoped VMEM: above v5e's 16 MiB / the 32 MiB defaults,
            # still inside v7x's 64 MiB physical budget.
            vmem_limit_bytes=48 * 1024 * 1024,
        ),
        cost_estimate=cost,
    )(x1p, x2tp, inv1p, inv2p)

    return out[:n1, :n2]


def _reference(x1, x2, eps=1e-8):
    # Pure-JAX reference mirroring the PyTorch code.
    n1 = jnp.linalg.norm(x1, axis=1)
    n2 = jnp.linalg.norm(x2, axis=1)
    x1 = x1 / jnp.maximum(n1, eps)[:, None]
    x2 = x2 / jnp.maximum(n2, eps)[:, None]
    sim = jnp.dot(x1, x2.T, precision=jax.lax.Precision.HIGHEST)
    return (sim + 1.0) / 2.0


if __name__ == "__main__":
    key = jax.random.PRNGKey(0)
    k1, k2, k3, k4, k5, k6 = jax.random.split(key, 6)

    # Small test (matches the module's implied shapes); includes a zero row to
    # exercise the eps clamp. Exercises the flattened-K 2-D grid path.
    N1, N2, D = 16, 8, 32
    x1 = jax.random.normal(k1, (N1, D), dtype=jnp.float32)
    x2 = jax.random.normal(k2, (N2, D), dtype=jnp.float32)
    x2 = x2.at[0].set(0.0)

    out = jax.block_until_ready(cosine_similarity_matrix(x1, x2))
    ref = _reference(x1, x2)
    assert out.shape == (N1, N2) and out.dtype == jnp.float32
    err = float(jnp.max(jnp.abs(out - ref)))
    assert jnp.allclose(out, ref, atol=1e-4, rtol=1e-4), f"max err {err}"

    # Medium test: multi-tile (i, j) grid, non-multiple-of-128 N2, padded K.
    M1, M2, D2 = 272, 300, 600
    y1 = jax.random.normal(k3, (M1, D2), dtype=jnp.float32)
    y2 = jax.random.normal(k4, (M2, D2), dtype=jnp.float32)

    out2 = jax.block_until_ready(cosine_similarity_matrix(y1, y2))
    ref2 = _reference(y1, y2)
    assert out2.shape == (M1, M2)
    err2 = float(jnp.max(jnp.abs(out2 - ref2)))
    assert jnp.allclose(out2, ref2, atol=1e-4, rtol=1e-4), f"max err {err2}"

    # Large-D test: exercises the 3-D grid path with the resident-output
    # accumulator (padded K = 3072, tk = 1024 -> 3 k steps).
    L1, L2, D3 = 64, 48, 2304
    z1 = jax.random.normal(k5, (L1, D3), dtype=jnp.float32)
    z2 = jax.random.normal(k6, (L2, D3), dtype=jnp.float32)

    out3 = jax.block_until_ready(cosine_similarity_matrix(z1, z2))
    ref3 = _reference(z1, z2)
    assert out3.shape == (L1, L2)
    err3 = float(jnp.max(jnp.abs(out3 - ref3)))
    assert jnp.allclose(out3, ref3, atol=1e-4, rtol=1e-4), f"max err {err3}"

    print("KERNEL_OK")
</pallas_src>

<mosaic_0001>
module attributes {stable_mosaic.version = 11 : i64} {
  func.func @_cossim_kernel_2d(%arg0: i32, %arg1: i32, %arg2: memref<8x128xf32, #tpu.memory_space<vmem>>, %arg3: memref<128x128xf32, #tpu.memory_space<vmem>>, %arg4: memref<8x1xf32, #tpu.memory_space<vmem>>, %arg5: memref<1x128xf32, #tpu.memory_space<vmem>>, %arg6: memref<8x128xf32, #tpu.memory_space<vmem>>) attributes {dimension_semantics = [#tpu.dimension_semantics<parallel>, #tpu.dimension_semantics<parallel>], iteration_bounds = array<i64: 2, 1>, scalar_prefetch = 0 : i64, scratch_operands = 0 : i64, tpu.core_type = #tpu.core_type<tc>, window_params = [{transform_indices = @transform_0, window_bounds = array<i64: 8, 128>}, {transform_indices = @transform_1, window_bounds = array<i64: 128, 128>}, {transform_indices = @transform_2, window_bounds = array<i64: 8, 1>}, {transform_indices = @transform_3, window_bounds = array<i64: 1, 128>}, {transform_indices = @transform_4, window_bounds = array<i64: 8, 128>}]} {
    %c0 = arith.constant 0 : index
    %c0_0 = arith.constant 0 : index
    %0 = vector.load %arg2[%c0, %c0_0] : memref<8x128xf32, #tpu.memory_space<vmem>>, vector<8x128xf32>
    %c0_1 = arith.constant 0 : index
    %c0_2 = arith.constant 0 : index
    %1 = vector.load %arg3[%c0_1, %c0_2] : memref<128x128xf32, #tpu.memory_space<vmem>>, vector<128x128xf32>
    %cst = arith.constant dense<0.000000e+00> : vector<8x128xf32>
    %2 = tpu.matmul %0, %1, %cst {dimension_numbers = #tpu.dot_dimension_numbers<[1], [0], [0], [1], [0, 0, 1, 1], [], []>, precision = #tpu.contract_precision<fp32>} : vector<8x128xf32>, vector<128x128xf32>, vector<8x128xf32> -> vector<8x128xf32>
    %c0_3 = arith.constant 0 : index
    %c0_4 = arith.constant 0 : index
    %3 = vector.load %arg4[%c0_3, %c0_4] : memref<8x1xf32, #tpu.memory_space<vmem>>, vector<8x1xf32>
    %cst_5 = arith.constant 5.000000e-01 : f32
    %4 = vector.broadcast %cst_5 : f32 to vector<8x1xf32>
    %5 = arith.mulf %3, %4 : vector<8x1xf32>
    %6 = vector.broadcast %5 : vector<8x1xf32> to vector<8x128xf32>
    %7 = arith.mulf %2, %6 : vector<8x128xf32>
    %c0_6 = arith.constant 0 : index
    %c0_7 = arith.constant 0 : index
    %8 = vector.load %arg5[%c0_6, %c0_7] : memref<1x128xf32, #tpu.memory_space<vmem>>, vector<1x128xf32>
    %9 = vector.broadcast %8 : vector<1x128xf32> to vector<8x128xf32>
    %10 = arith.mulf %7, %9 : vector<8x128xf32>
    %cst_8 = arith.constant 5.000000e-01 : f32
    %11 = vector.broadcast %cst_8 : f32 to vector<8x128xf32>
    %12 = arith.addf %10, %11 : vector<8x128xf32>
    %c0_9 = arith.constant 0 : index
    %c0_10 = arith.constant 0 : index
    %13 = vector.load %arg6[%c0_9, %c0_10] : memref<8x128xf32, #tpu.memory_space<vmem>>, vector<8x128xf32>
    tpu.vector_store %arg6[%c0_9, %c0_10], %12 {strides = array<i32>} : memref<8x128xf32, #tpu.memory_space<vmem>>, vector<8x128xf32>,
    return
  }
  func.func @transform_0(%arg0: i32, %arg1: i32) -> (i32, i32) {
    %c0_i32 = arith.constant 0 : i32
    %c0_i32_0 = arith.constant 0 : i32
    return %arg0, %c0_i32 : i32, i32
  }
  func.func @transform_1(%arg0: i32, %arg1: i32) -> (i32, i32) {
    %c0_i32 = arith.constant 0 : i32
    %c0_i32_0 = arith.constant 0 : i32
    return %c0_i32, %arg1 : i32, i32
  }
  func.func @transform_2(%arg0: i32, %arg1: i32) -> (i32, i32) {
    %c0_i32 = arith.constant 0 : i32
    %c0_i32_0 = arith.constant 0 : i32
    return %arg0, %c0_i32 : i32, i32
  }
  func.func @transform_3(%arg0: i32, %arg1: i32) -> (i32, i32) {
    %c0_i32 = arith.constant 0 : i32
    %c0_i32_0 = arith.constant 0 : i32
    return %c0_i32, %arg1 : i32, i32
  }
  func.func @transform_4(%arg0: i32, %arg1: i32) -> (i32, i32) {
    %c0_i32 = arith.constant 0 : i32
    return %arg0, %arg1 : i32, i32
  }
}

</mosaic_0001>

<llo_original>
// kernel: tpu_custom_call.1
$region0: #{tpu_custom_call.1}
  #allocation0 [shape = 'u32[]', space=smem, size = 0x4, offset = 0x4, fixed_abs, tag = 'smem constant byte address 0x4 - core index']
  #allocation1 [shape = 'u32[144,128]{1,0:T(1,128)}', space=vmem, size = 0x12000, scoped, tag = 'internal scratch']
  %s0 = inlined_call_operand.vmem [shape: f32[16,128], index: 0, kind: input, shape index: {}]
  %s1 = inlined_call_operand.hbm [shape: f32[128,128], index: 1, kind: input, shape index: {}]
  %s2 = inlined_call_operand.vmem [shape: f32[16,1], index: 2, kind: input, shape index: {}]
  %s3 = inlined_call_operand.vmem [shape: f32[1,128], index: 3, kind: input, shape index: {}]
  %s4 = inlined_call_operand.hbm [shape: f32[16,128], index: 4, kind: output, shape index: {}]
  %s5 = sld [smem:[#allocation0]]
  $region53: #{tpu_custom_call.1} parent=0
    _
  %s7 = ssub.s32 1, %s5
  %s8 = scalar_select 0, %s7, %s5
  $region1: #{tpu_custom_call.1} parent=0
    #allocation2 [shape = 'u8[65536]{0}', space=vmem, size = 0x10000, scoped, tag = 'input window, operand 1, single buffered']
    #allocation3 [shape = 's32[2]{0}', space=sflag, size = 0x8, scoped, tag = 'scoped memory for tpu_custom_call.1']
    #allocation4 [shape = 's32[2]{0}', space=sflag, size = 0x8, scoped, tag = 'scoped memory for tpu_custom_call.1']
    #allocation5 [shape = 'u8[8192]{0}', space=vmem, size = 0x2000, scoped, tag = 'output window, operand 0']
    %9 = vsyncpa [#allocation3], 0
    %10 = vsyncpa [#allocation4], 0
    %s11 = scalar_lea.sflag [#allocation4], 1
    %12 = vsyncpa %s11, 0
    loop: start=0, step=1, limit=4
    $region2: #{tpu_custom_call.1} parent=1 // loop_pre_header
      _
    $region3: #{tpu_custom_call.1} parent=1 // loop_header
      %s14 = sphi 0, %s18
      %p15 = scmp.ge.s32.totalorder %s14, 4
      %s21 = sphi 0, %s33
      %s22 = sphi 0, %s29
      %s23 = sphi 0, %s21
      %s24 = sphi 0, %s22
      %s25 = sphi 0, %s23
      %s26 = sphi 0, %s24
      %s36 = sphi 0, %s38
      %s39 = sphi 0, %s36
      %s40 = sphi 0, %s39
      %s56 = sphi 0, %s40
      %s62 = sphi 0, %s64
      %s65 = sphi 0, %s62
      %s66 = sphi 0, %s65
      %s82 = sphi 0, %s66
      %s88 = sphi 0, %s90
      %s91 = sphi 0, %s88
      %s92 = sphi 0, %s91
      %s108 = sphi 0, %s92
      %s114 = sphi 0, %s116
      %s117 = sphi 0, %s114
      %s118 = sphi 0, %s117
      %s134 = sphi 0, %s118
      %s142 = sphi 0, %s144
      %s145 = sphi 0, %s142
      %s146 = sphi 0, %s145
      %s162 = sphi 0, %s146
    $region4: #{tpu_custom_call.1} parent=1 // loop_header_branch
      %17 = sbr.rel (%p15) target = $region8
    $region5: #{tpu_custom_call.1} parent=1 // loop_body
      %s19 = ssub.s32 %s14, 1
      %s20 = ssub.s32 %s14, 2
      %s27 = sadd.s32 1, %s22
      %p28 = scmp.ge.s32.totalorder %s27, 1
      %s29 = scalar_select %p28, 0, %s27
      %s30 = sadd.s32 1, %s21
      %s31 = scalar_select %p28, %s30, %s21
      %p32 = scmp.ge.s32.totalorder %s31, 2
      %s33 = scalar_select %p32, 0, %s31
      %s34 = ssub.s32 %s21, %s33
      %p35 = scmp.eq.s32.totalorder %s34, 0
      %s37 = sadd.s32 %s36, 1
      %s38 = scalar_select %p35, %s36, %s37
      %p41 = pneg %p35
      %p42 = scmp.eq.s32.totalorder %s14, 1
      %p43 = por %p41, %p42
      %p44 = scmp.ne.s32.totalorder %s36, %s39
      %p45 = scmp.eq.s32.totalorder %s14, 0
      %p46 = por %p44, %p45
      %p47 = scmp.ne.s32.totalorder %s36, %s39
      %p48 = scmp.eq.s32.totalorder %s19, 1
      %p49 = por %p47, %p48
      %p50 = scmp.ne.s32.totalorder %s39, %s40
      %p51 = scmp.eq.s32.totalorder %s19, 0
      %p52 = por %p50, %p51
      %p53 = scmp.ne.s32.totalorder %s39, %s40
      %p54 = scmp.eq.s32.totalorder %s20, 1
      %p55 = por %p53, %p54
      %p57 = scmp.ne.s32.totalorder %s40, %s56
      %p58 = scmp.eq.s32.totalorder %s20, 0
      %p59 = por %p57, %p58
      %s60 = ssub.s32 %s22, %s29
      %p61 = scmp.eq.s32.totalorder %s60, 0
      %s63 = sadd.s32 %s62, 1
      %s64 = scalar_select %p61, %s62, %s63
      %p67 = pneg %p61
      %p68 = scmp.eq.s32.totalorder %s14, 1
      %p69 = por %p67, %p68
      %p70 = scmp.ne.s32.totalorder %s62, %s65
      %p71 = scmp.eq.s32.totalorder %s14, 0
      %p72 = por %p70, %p71
      %p73 = scmp.ne.s32.totalorder %s62, %s65
      %p74 = scmp.eq.s32.totalorder %s19, 1
      %p75 = por %p73, %p74
      %p76 = scmp.ne.s32.totalorder %s65, %s66
      %p77 = scmp.eq.s32.totalorder %s19, 0
      %p78 = por %p76, %p77
      %p79 = scmp.ne.s32.totalorder %s65, %s66
      %p80 = scmp.eq.s32.totalorder %s20, 1
      %p81 = por %p79, %p80
      %p83 = scmp.ne.s32.totalorder %s66, %s82
      %p84 = scmp.eq.s32.totalorder %s20, 0
      %p85 = por %p83, %p84
      %s86 = ssub.s32 %s21, %s33
      %p87 = scmp.eq.s32.totalorder %s86, 0
      %s89 = sadd.s32 %s88, 1
      %s90 = scalar_select %p87, %s88, %s89
      %p93 = pneg %p87
      %p94 = scmp.eq.s32.totalorder %s14, 1
      %p95 = por %p93, %p94
      %p96 = scmp.ne.s32.totalorder %s88, %s91
      %p97 = scmp.eq.s32.totalorder %s14, 0
      %p98 = por %p96, %p97
      %p99 = scmp.ne.s32.totalorder %s88, %s91
      %p100 = scmp.eq.s32.totalorder %s19, 1
      %p101 = por %p99, %p100
      %p102 = scmp.ne.s32.totalorder %s91, %s92
      %p103 = scmp.eq.s32.totalorder %s19, 0
      %p104 = por %p102, %p103
      %p105 = scmp.ne.s32.totalorder %s91, %s92
      %p106 = scmp.eq.s32.totalorder %s20, 1
      %p107 = por %p105, %p106
      %p109 = scmp.ne.s32.totalorder %s92, %s108
      %p110 = scmp.eq.s32.totalorder %s20, 0
      %p111 = por %p109, %p110
      %s112 = ssub.s32 %s22, %s29
      %p113 = scmp.eq.s32.totalorder %s112, 0
      %s115 = sadd.s32 %s114, 1
      %s116 = scalar_select %p113, %s114, %s115
      %p119 = pneg %p113
      %p120 = scmp.eq.s32.totalorder %s14, 1
      %p121 = por %p119, %p120
      %p122 = scmp.ne.s32.totalorder %s114, %s117
      %p123 = scmp.eq.s32.totalorder %s14, 0
      %p124 = por %p122, %p123
      %p125 = scmp.ne.s32.totalorder %s114, %s117
      %p126 = scmp.eq.s32.totalorder %s19, 1
      %p127 = por %p125, %p126
      %p128 = scmp.ne.s32.totalorder %s117, %s118
      %p129 = scmp.eq.s32.totalorder %s19, 0
      %p130 = por %p128, %p129
      %p131 = scmp.ne.s32.totalorder %s117, %s118
      %p132 = scmp.eq.s32.totalorder %s20, 1
      %p133 = por %p131, %p132
      %p135 = scmp.ne.s32.totalorder %s118, %s134
      %p136 = scmp.eq.s32.totalorder %s20, 0
      %p137 = por %p135, %p136
      %s138 = ssub.s32 %s21, %s33
      %s139 = ssub.s32 %s22, %s29
      %s140 = sor.u32 %s138, %s139
      %p141 = scmp.eq.s32.totalorder %s140, 0
      %s143 = sadd.s32 %s142, 1
      %s144 = scalar_select %p141, %s142, %s143
      %p147 = pneg %p141
      %p148 = scmp.eq.s32.totalorder %s14, 1
      %p149 = por %p147, %p148
      %p150 = scmp.ne.s32.totalorder %s142, %s145
      %p151 = scmp.eq.s32.totalorder %s14, 0
      %p152 = por %p150, %p151
      %p153 = scmp.ne.s32.totalorder %s142, %s145
      %p154 = scmp.eq.s32.totalorder %s19, 1
      %p155 = por %p153, %p154
      %p156 = scmp.ne.s32.totalorder %s145, %s146
      %p157 = scmp.eq.s32.totalorder %s19, 0
      %p158 = por %p156, %p157
      %p159 = scmp.ne.s32.totalorder %s145, %s146
      %p160 = scmp.eq.s32.totalorder %s20, 1
      %p161 = por %p159, %p160
      %p163 = scmp.ne.s32.totalorder %s146, %s162
      %p164 = scmp.eq.s32.totalorder %s20, 0
      %p165 = por %p163, %p164
      %p166 = scmp.le.s32.totalorder 1, %s14
      %p167 = scmp.lt.s32.totalorder %s14, 3
      %p168 = pnand %p166, %p167
      %p169 = pneg %p168
      // Predicated region
      $region9: #{tpu_custom_call.1} parent=5 // pred_check
        _
      $region10: #{tpu_custom_call.1} parent=5 // pred_check_branch
        %171 = sbr.rel (%p168) target = $region12
      $region11: #{tpu_custom_call.1} parent=5 // pred_region
        %s172 = ssub.s32 %s14, 1
        // Predicated region
        $region13: #{tpu_custom_call.1} parent=11 // pred_check
          %p173 = pneg %p78
        $region14: #{tpu_custom_call.1} parent=11 // pred_check_branch
          %175 = sbr.rel (%p173) target = $region16
        $region15: #{tpu_custom_call.1} parent=11 // pred_region
          %s177 = ssub.s32 2048, 2048
          %178 = vsyncadd [#allocation3], %s177
          %s179 = smul.addr %s24, 128
          %s180 = scalar_lea.hbm %s1, %s179
          %s181 = sshll.u32 [#allocation2], 4
          %s182 = int_to_ptr.vmem [resolvable:$true] %s181
          %187 = dma.hbm_to_vmem [thread:$0]  %s180, 2048, %s182, [#allocation3], 128, 128, 8
        $region16: #{tpu_custom_call.1} parent=11 // pred_fallthru
          _
        // Predicated region
        $region17: #{tpu_custom_call.1} parent=11 // pred_check
          %p188 = pneg %p130
        $region18: #{tpu_custom_call.1} parent=11 // pred_check_branch
          %190 = sbr.rel (%p188) target = $region20
        $region19: #{tpu_custom_call.1} parent=11 // pred_region
          %p191 = scmp.lt.s32.totalorder %s24, 0
          %s192 = scalar_select %p191, %s24, 0
          %s193 = scalar_lea.vmem %s3, %s192
        $region20: #{tpu_custom_call.1} parent=11 // pred_fallthru
          _
      $region12: #{tpu_custom_call.1} parent=5 // pred_fallthru
        _
      %p194 = scmp.lt.s32.totalorder %s14, 2
      // Predicated region
      $region21: #{tpu_custom_call.1} parent=5 // pred_check
        %p195 = pneg %p194
      $region22: #{tpu_custom_call.1} parent=5 // pred_check_branch
        %197 = sbr.rel (%p195) target = $region24
      $region23: #{tpu_custom_call.1} parent=5 // pred_region
        // Predicated region
        $region25: #{tpu_custom_call.1} parent=23 // pred_check
          %p198 = pneg %p46
        $region26: #{tpu_custom_call.1} parent=23 // pred_check_branch
          %200 = sbr.rel (%p198) target = $region28
        $region27: #{tpu_custom_call.1} parent=23 // pred_region
          %p201 = scmp.lt.s32.totalorder %s21, 1
          %s202 = scalar_select %p201, %s21, 1
          %s203 = smul.addr %s202, 8
          %s204 = scalar_lea.vmem %s0, %s203
        $region28: #{tpu_custom_call.1} parent=23 // pred_fallthru
          _
        // Predicated region
        $region29: #{tpu_custom_call.1} parent=23 // pred_check
          %p205 = pneg %p98
        $region30: #{tpu_custom_call.1} parent=23 // pred_check_branch
          %207 = sbr.rel (%p205) target = $region32
        $region31: #{tpu_custom_call.1} parent=23 // pred_region
          %p208 = scmp.lt.s32.totalorder %s21, 1
          %s209 = scalar_select %p208, %s21, 1
          %s210 = smul.addr %s209, 8
          %s211 = scalar_lea.vmem %s2, %s210
        $region32: #{tpu_custom_call.1} parent=23 // pred_fallthru
          _
      $region24: #{tpu_custom_call.1} parent=5 // pred_fallthru
        _
      %p212 = scmp.le.s32.totalorder 1, %s14
      %p213 = scmp.lt.s32.totalorder %s14, 3
      %p214 = pnand %p212, %p213
      %p215 = pneg %p214
      // Predicated region
      $region33: #{tpu_custom_call.1} parent=5 // pred_check
        _
      $region34: #{tpu_custom_call.1} parent=5 // pred_check_branch
        %217 = sbr.rel (%p214) target = $region36
      $region35: #{tpu_custom_call.1} parent=5 // pred_region
        %s218 = ssub.s32 %s14, 1
        // Predicated region
        $region37: #{tpu_custom_call.1} parent=35 // pred_check
          %p219 = pneg %p78
        $region38: #{tpu_custom_call.1} parent=35 // pred_check_branch
          %221 = sbr.rel (%p219) target = $region40
        $region39: #{tpu_custom_call.1} parent=35 // pred_region
          %222 = dma.done [#allocation3], 2048
        $region40: #{tpu_custom_call.1} parent=35 // pred_fallthru
          _
        %p223 = scmp.lt.s32.totalorder %s23, 1
        %s224 = scalar_select %p223, %s23, 1
        %s225 = smul.addr %s224, 8
        %s226 = scalar_lea.vmem %s0, %s225
        %p227 = pneg %p52
        %p228 = pneg %p49
        %p229 = pneg %p78
        %p230 = pneg %p75
        %p231 = scmp.lt.s32.totalorder %s23, 1
        %s232 = scalar_select %p231, %s23, 1
        %s233 = smul.addr %s232, 8
        %s234 = scalar_lea.vmem %s2, %s233
        %p235 = pneg %p104
        %p236 = pneg %p101
        %p237 = scmp.lt.s32.totalorder %s24, 0
        %s238 = scalar_select %p237, %s24, 0
        %s239 = scalar_lea.vmem %s3, %s238
        %p240 = pneg %p130
        %p241 = pneg %p127
        %p242 = pneg %p158
        %p243 = pneg %p155
        %s244 = sand.u32 %s145, 1
        %s245 = scalar_lea.sflag [#allocation4], %s244
        %s246 = sand.u32 %s145, 1
        %s247 = smul.addr %s246, 8
        %s248 = scalar_lea.vmem [#allocation5], %s247
        %p249 = scmp.lt.s32.totalorder %s23, 1
        %s250 = scalar_select %p249, %s23, 1
        %s251 = smul.addr %s250, 8
        %s252 = scalar_lea.vmem %s0, %s251
        %p253 = scmp.lt.s32.totalorder %s23, 1
        %s254 = scalar_select %p253, %s23, 1
        %s255 = smul.addr %s254, 8
        %s256 = scalar_lea.vmem %s2, %s255
        %p257 = scmp.lt.s32.totalorder %s24, 0
        %s258 = scalar_select %p257, %s24, 0
        %s259 = scalar_lea.vmem %s3, %s258
        %v260 = vld [vmem:[%s252] sm:$0xff]
        %v261 = vld [vmem:[#allocation2] sm:$0xff]
        %v262 = vld [vmem:[#allocation2 + $0x8] sm:$0xff]
        %v263 = vld [vmem:[#allocation2 + $0x10] sm:$0xff]
        %v264 = vld [vmem:[#allocation2 + $0x18] sm:$0xff]
        %v265 = vld [vmem:[#allocation2 + $0x20] sm:$0xff]
        %v266 = vld [vmem:[#allocation2 + $0x28] sm:$0xff]
        %v267 = vld [vmem:[#allocation2 + $0x30] sm:$0xff]
        %v268 = vld [vmem:[#allocation2 + $0x38] sm:$0xff]
        %v269 = vld [vmem:[#allocation2 + $0x40] sm:$0xff]
        %v270 = vld [vmem:[#allocation2 + $0x48] sm:$0xff]
        %v271 = vld [vmem:[#allocation2 + $0x50] sm:$0xff]
        %v272 = vld [vmem:[#allocation2 + $0x58] sm:$0xff]
        %v273 = vld [vmem:[#allocation2 + $0x60] sm:$0xff]
        %v274 = vld [vmem:[#allocation2 + $0x68] sm:$0xff]
        %v275 = vld [vmem:[#allocation2 + $0x70] sm:$0xff]
        %v276 = vld [vmem:[#allocation2 + $0x78] sm:$0xff]
        %277 = vmatprep.subr.mxu0 0.0
        %v278 = vand.u32 %v276, 4294901760
        %279 = vmatpush1.msra.mxu0 %v278
        %280 = vmatprep.subr.mxu0 0.0
        %v281 = vand.u32 %v275, 4294901760
        %282 = vmatpush1.msra.mxu0 %v281
        %283 = vmatprep.subr.mxu0 0.0
        %v284 = vand.u32 %v274, 4294901760
        %285 = vmatpush1.msra.mxu0 %v284
        %286 = vmatprep.subr.mxu0 0.0
        %v287 = vand.u32 %v273, 4294901760
        %288 = vmatpush1.msra.mxu0 %v287
        %289 = vmatprep.subr.mxu0 0.0
        %v290 = vand.u32 %v272, 4294901760
        %291 = vmatpush1.msra.mxu0 %v290
        %292 = vmatprep.subr.mxu0 0.0
        %v293 = vand.u32 %v271, 4294901760
        %294 = vmatpush1.msra.mxu0 %v293
        %295 = vmatprep.subr.mxu0 0.0
        %v296 = vand.u32 %v270, 4294901760
        %297 = vmatpush1.msra.mxu0 %v296
        %298 = vmatprep.subr.mxu0 0.0
        %v299 = vand.u32 %v269, 4294901760
        %300 = vmatpush1.msra.mxu0 %v299
        %301 = vmatprep.subr.mxu0 0.0
        %v302 = vand.u32 %v268, 4294901760
        %303 = vmatpush1.msra.mxu0 %v302
        %304 = vmatprep.subr.mxu0 0.0
        %v305 = vand.u32 %v267, 4294901760
        %306 = vmatpush1.msra.mxu0 %v305
        %307 = vmatprep.subr.mxu0 0.0
        %v308 = vand.u32 %v266, 4294901760
        %309 = vmatpush1.msra.mxu0 %v308
        %310 = vmatprep.subr.mxu0 0.0
        %v311 = vand.u32 %v265, 4294901760
        %312 = vmatpush1.msra.mxu0 %v311
        %313 = vmatprep.subr.mxu0 0.0
        %v314 = vand.u32 %v264, 4294901760
        %315 = vmatpush1.msra.mxu0 %v314
        %316 = vmatprep.subr.mxu0 0.0
        %v317 = vand.u32 %v263, 4294901760
        %318 = vmatpush1.msra.mxu0 %v317
        %319 = vmatprep.subr.mxu0 0.0
        %v320 = vand.u32 %v262, 4294901760
        %321 = vmatpush1.msra.mxu0 %v320
        %322 = vmatprep.subr.mxu0 0.0
        %v323 = vand.u32 %v261, 4294901760
        %324 = vmatpush1.msra.mxu0 %v323
        %325 = vmatprep.subr.mxu0 0.0
        %326 = vmatpush2.msra.mxu0 0.0
        %327 = vmatprep.subr.mxu0 0.0
        %328 = vmatpush2.msra.mxu0 0.0
        %329 = vmatprep.subr.mxu0 0.0
        %330 = vmatpush2.msra.mxu0 0.0
        %331 = vmatprep.subr.mxu0 0.0
        %332 = vmatpush2.msra.mxu0 0.0
        %333 = vmatprep.subr.mxu0 0.0
        %334 = vmatpush2.msra.mxu0 0.0
        %335 = vmatprep.subr.mxu0 0.0
        %336 = vmatpush2.msra.mxu0 0.0
        %337 = vmatprep.subr.mxu0 0.0
        %338 = vmatpush2.msra.mxu0 0.0
        %339 = vmatprep.subr.mxu0 0.0
        %340 = vmatpush2.msra.mxu0 0.0
        %341 = vmatprep.subr.mxu0 0.0
        %342 = vmatpush2.msra.mxu0 0.0
        %343 = vmatprep.subr.mxu0 0.0
        %344 = vmatpush2.msra.mxu0 0.0
        %345 = vmatprep.subr.mxu0 0.0
        %346 = vmatpush2.msra.mxu0 0.0
        %347 = vmatprep.subr.mxu0 0.0
        %348 = vmatpush2.msra.mxu0 0.0
        %349 = vmatprep.subr.mxu0 0.0
        %350 = vmatpush2.msra.mxu0 0.0
        %351 = vmatprep.subr.mxu0 0.0
        %352 = vmatpush2.msra.mxu0 0.0
        %353 = vmatprep.subr.mxu0 0.0
        %354 = vmatpush2.msra.mxu0 0.0
        %355 = vmatprep.subr.mxu0 0.0
        %356 = vmatpush2.msra.mxu0 0.0
        %357 = vmatprep.mubr.f32.mxu0 0.0
        %v358 = vand.u32 %v260, 4294901760
        %v359 = vsub.f32 %v260, %v358
        %v360 = vand.u32 %v359, 4294901760
        %v361 = vsub.f32 %v359, %v360
        %v362 = vand.u32 %v361, 4294901760
        %363 = vmatmul.mubr.f32.gmra.mxu0 %v362
        %v364 = vpop.f32.mrf.mxu0
        %v365 = vadd.f32 0.0, %v364
        %v366 = vpop.f32.mrf.mxu0
        %367 = vdwg.mxu0
        %368 = vmatprep.subr.mxu0 0.0
        %v369 = vand.u32 %v276, 4294901760
        %v370 = vsub.f32 %v276, %v369
        %v371 = vand.u32 %v370, 4294901760
        %v372 = vsub.f32 %v370, %v371
        %v373 = vand.u32 %v372, 4294901760
        %374 = vmatpush1.msra.mxu0 %v373
        %375 = vmatprep.subr.mxu0 0.0
        %v376 = vand.u32 %v275, 4294901760
        %v377 = vsub.f32 %v275, %v376
        %v378 = vand.u32 %v377, 4294901760
        %v379 = vsub.f32 %v377, %v378
        %v380 = vand.u32 %v379, 4294901760
        %381 = vmatpush1.msra.mxu0 %v380
        %382 = vmatprep.subr.mxu0 0.0
        %v383 = vand.u32 %v274, 4294901760
        %v384 = vsub.f32 %v274, %v383
        %v385 = vand.u32 %v384, 4294901760
        %v386 = vsub.f32 %v384, %v385
        %v387 = vand.u32 %v386, 4294901760
        %388 = vmatpush1.msra.mxu0 %v387
        %389 = vmatprep.subr.mxu0 0.0
        %v390 = vand.u32 %v273, 4294901760
        %v391 = vsub.f32 %v273, %v390
        %v392 = vand.u32 %v391, 4294901760
        %v393 = vsub.f32 %v391, %v392
        %v394 = vand.u32 %v393, 4294901760
        %395 = vmatpush1.msra.mxu0 %v394
        %396 = vmatprep.subr.mxu0 0.0
        %v397 = vand.u32 %v272, 4294901760
        %v398 = vsub.f32 %v272, %v397
        %v399 = vand.u32 %v398, 4294901760
        %v400 = vsub.f32 %v398, %v399
        %v401 = vand.u32 %v400, 4294901760
        %402 = vmatpush1.msra.mxu0 %v401
        %403 = vmatprep.subr.mxu0 0.0
        %v404 = vand.u32 %v271, 4294901760
        %v405 = vsub.f32 %v271, %v404
        %v406 = vand.u32 %v405, 4294901760
        %v407 = vsub.f32 %v405, %v406
        %v408 = vand.u32 %v407, 4294901760
        %409 = vmatpush1.msra.mxu0 %v408
        %410 = vmatprep.subr.mxu0 0.0
        %v411 = vand.u32 %v270, 4294901760
        %v412 = vsub.f32 %v270, %v411
        %v413 = vand.u32 %v412, 4294901760
        %v414 = vsub.f32 %v412, %v413
        %v415 = vand.u32 %v414, 4294901760
        %416 = vmatpush1.msra.mxu0 %v415
        %417 = vmatprep.subr.mxu0 0.0
        %v418 = vand.u32 %v269, 4294901760
        %v419 = vsub.f32 %v269, %v418
        %v420 = vand.u32 %v419, 4294901760
        %v421 = vsub.f32 %v419, %v420
        %v422 = vand.u32 %v421, 4294901760
        %423 = vmatpush1.msra.mxu0 %v422
        %424 = vmatprep.subr.mxu0 0.0
        %v425 = vand.u32 %v268, 4294901760
        %v426 = vsub.f32 %v268, %v425
        %v427 = vand.u32 %v426, 4294901760
        %v428 = vsub.f32 %v426, %v427
        %v429 = vand.u32 %v428, 4294901760
        %430 = vmatpush1.msra.mxu0 %v429
        %431 = vmatprep.subr.mxu0 0.0
        %v432 = vand.u32 %v267, 4294901760
        %v433 = vsub.f32 %v267, %v432
        %v434 = vand.u32 %v433, 4294901760
        %v435 = vsub.f32 %v433, %v434
        %v436 = vand.u32 %v435, 4294901760
        %437 = vmatpush1.msra.mxu0 %v436
        %438 = vmatprep.subr.mxu0 0.0
        %v439 = vand.u32 %v266, 4294901760
        %v440 = vsub.f32 %v266, %v439
        %v441 = vand.u32 %v440, 4294901760
        %v442 = vsub.f32 %v440, %v441
        %v443 = vand.u32 %v442, 4294901760
        %444 = vmatpush1.msra.mxu0 %v443
        %445 = vmatprep.subr.mxu0 0.0
        %v446 = vand.u32 %v265, 4294901760
        %v447 = vsub.f32 %v265, %v446
        %v448 = vand.u32 %v447, 4294901760
        %v449 = vsub.f32 %v447, %v448
        %v450 = vand.u32 %v449, 4294901760
        %451 = vmatpush1.msra.mxu0 %v450
        %452 = vmatprep.subr.mxu0 0.0
        %v453 = vand.u32 %v264, 4294901760
        %v454 = vsub.f32 %v264, %v453
        %v455 = vand.u32 %v454, 4294901760
        %v456 = vsub.f32 %v454, %v455
        %v457 = vand.u32 %v456, 4294901760
        %458 = vmatpush1.msra.mxu0 %v457
        %459 = vmatprep.subr.mxu0 0.0
        %v460 = vand.u32 %v263, 4294901760
        %v461 = vsub.f32 %v263, %v460
        %v462 = vand.u32 %v461, 4294901760
        %v463 = vsub.f32 %v461, %v462
        %v464 = vand.u32 %v463, 4294901760
        %465 = vmatpush1.msra.mxu0 %v464
        %466 = vmatprep.subr.mxu0 0.0
        %v467 = vand.u32 %v262, 4294901760
        %v468 = vsub.f32 %v262, %v467
        %v469 = vand.u32 %v468, 4294901760
        %v470 = vsub.f32 %v468, %v469
        %v471 = vand.u32 %v470, 4294901760
        %472 = vmatpush1.msra.mxu0 %v471
        %473 = vmatprep.subr.mxu0 0.0
        %v474 = vand.u32 %v261, 4294901760
        %v475 = vsub.f32 %v261, %v474
        %v476 = vand.u32 %v475, 4294901760
        %v477 = vsub.f32 %v475, %v476
        %v478 = vand.u32 %v477, 4294901760
        %479 = vmatpush1.msra.mxu0 %v478
        %480 = vmatprep.subr.mxu0 0.0
        %481 = vmatpush2.msra.mxu0 0.0
        %482 = vmatprep.subr.mxu0 0.0
        %483 = vmatpush2.msra.mxu0 0.0
        %484 = vmatprep.subr.mxu0 0.0
        %485 = vmatpush2.msra.mxu0 0.0
        %486 = vmatprep.subr.mxu0 0.0
        %487 = vmatpush2.msra.mxu0 0.0
        %488 = vmatprep.subr.mxu0 0.0
        %489 = vmatpush2.msra.mxu0 0.0
        %490 = vmatprep.subr.mxu0 0.0
        %491 = vmatpush2.msra.mxu0 0.0
        %492 = vmatprep.subr.mxu0 0.0
        %493 = vmatpush2.msra.mxu0 0.0
        %494 = vmatprep.subr.mxu0 0.0
        %495 = vmatpush2.msra.mxu0 0.0
        %496 = vmatprep.subr.mxu0 0.0
        %497 = vmatpush2.msra.mxu0 0.0
        %498 = vmatprep.subr.mxu0 0.0
        %499 = vmatpush2.msra.mxu0 0.0
        %500 = vmatprep.subr.mxu0 0.0
        %501 = vmatpush2.msra.mxu0 0.0
        %502 = vmatprep.subr.mxu0 0.0
        %503 = vmatpush2.msra.mxu0 0.0
        %504 = vmatprep.subr.mxu0 0.0
        %505 = vmatpush2.msra.mxu0 0.0
        %506 = vmatprep.subr.mxu0 0.0
        %507 = vmatpush2.msra.mxu0 0.0
        %508 = vmatprep.subr.mxu0 0.0
        %509 = vmatpush2.msra.mxu0 0.0
        %510 = vmatprep.subr.mxu0 0.0
        %511 = vmatpush2.msra.mxu0 0.0
        %512 = vmatprep.mubr.f32.mxu0 0.0
        %v513 = vand.u32 %v260, 4294901760
        %514 = vmatmul.mubr.f32.gmra.mxu0 %v513
        %v515 = vpop.f32.mrf.mxu0
        %v516 = vadd.f32 %v365, %v515
        %v517 = vpop.f32.mrf.mxu0
        %518 = vdwg.mxu0
        %519 = vmatprep.subr.mxu0 0.0
        %v520 = vand.u32 %v276, 4294901760
        %v521 = vsub.f32 %v276, %v520
        %522 = vmatpush1.msra.mxu0 %v521
        %523 = vmatprep.subr.mxu0 0.0
        %v524 = vand.u32 %v275, 4294901760
        %v525 = vsub.f32 %v275, %v524
        %526 = vmatpush1.msra.mxu0 %v525
        %527 = vmatprep.subr.mxu0 0.0
        %v528 = vand.u32 %v274, 4294901760
        %v529 = vsub.f32 %v274, %v528
        %530 = vmatpush1.msra.mxu0 %v529
        %531 = vmatprep.subr.mxu0 0.0
        %v532 = vand.u32 %v273, 4294901760
        %v533 = vsub.f32 %v273, %v532
        %534 = vmatpush1.msra.mxu0 %v533
        %535 = vmatprep.subr.mxu0 0.0
        %v536 = vand.u32 %v272, 4294901760
        %v537 = vsub.f32 %v272, %v536
        %538 = vmatpush1.msra.mxu0 %v537
        %539 = vmatprep.subr.mxu0 0.0
        %v540 = vand.u32 %v271, 4294901760
        %v541 = vsub.f32 %v271, %v540
        %542 = vmatpush1.msra.mxu0 %v541
        %543 = vmatprep.subr.mxu0 0.0
        %v544 = vand.u32 %v270, 4294901760
        %v545 = vsub.f32 %v270, %v544
        %546 = vmatpush1.msra.mxu0 %v545
        %547 = vmatprep.subr.mxu0 0.0
        %v548 = vand.u32 %v269, 4294901760
        %v549 = vsub.f32 %v269, %v548
        %550 = vmatpush1.msra.mxu0 %v549
        %551 = vmatprep.subr.mxu0 0.0
        %v552 = vand.u32 %v268, 4294901760
        %v553 = vsub.f32 %v268, %v552
        %554 = vmatpush1.msra.mxu0 %v553
        %555 = vmatprep.subr.mxu0 0.0
        %v556 = vand.u32 %v267, 4294901760
        %v557 = vsub.f32 %v267, %v556
        %558 = vmatpush1.msra.mxu0 %v557
        %559 = vmatprep.subr.mxu0 0.0
        %v560 = vand.u32 %v266, 4294901760
        %v561 = vsub.f32 %v266, %v560
        %562 = vmatpush1.msra.mxu0 %v561
        %563 = vmatprep.subr.mxu0 0.0
        %v564 = vand.u32 %v265, 4294901760
        %v565 = vsub.f32 %v265, %v564
        %566 = vmatpush1.msra.mxu0 %v565
        %567 = vmatprep.subr.mxu0 0.0
        %v568 = vand.u32 %v264, 4294901760
        %v569 = vsub.f32 %v264, %v568
        %570 = vmatpush1.msra.mxu0 %v569
        %571 = vmatprep.subr.mxu0 0.0
        %v572 = vand.u32 %v263, 4294901760
        %v573 = vsub.f32 %v263, %v572
        %574 = vmatpush1.msra.mxu0 %v573
        %575 = vmatprep.subr.mxu0 0.0
        %v576 = vand.u32 %v262, 4294901760
        %v577 = vsub.f32 %v262, %v576
        %578 = vmatpush1.msra.mxu0 %v577
        %579 = vmatprep.subr.mxu0 0.0
        %v580 = vand.u32 %v261, 4294901760
        %v581 = vsub.f32 %v261, %v580
        %582 = vmatpush1.msra.mxu0 %v581
        %583 = vmatprep.subr.mxu0 0.0
        %584 = vmatpush2.msra.mxu0 0.0
        %585 = vmatprep.subr.mxu0 0.0
        %586 = vmatpush2.msra.mxu0 0.0
        %587 = vmatprep.subr.mxu0 0.0
        %588 = vmatpush2.msra.mxu0 0.0
        %589 = vmatprep.subr.mxu0 0.0
        %590 = vmatpush2.msra.mxu0 0.0
        %591 = vmatprep.subr.mxu0 0.0
        %592 = vmatpush2.msra.mxu0 0.0
        %593 = vmatprep.subr.mxu0 0.0
        %594 = vmatpush2.msra.mxu0 0.0
        %595 = vmatprep.subr.mxu0 0.0
        %596 = vmatpush2.msra.mxu0 0.0
        %597 = vmatprep.subr.mxu0 0.0
        %598 = vmatpush2.msra.mxu0 0.0
        %599 = vmatprep.subr.mxu0 0.0
        %600 = vmatpush2.msra.mxu0 0.0
        %601 = vmatprep.subr.mxu0 0.0
        %602 = vmatpush2.msra.mxu0 0.0
        %603 = vmatprep.subr.mxu0 0.0
        %604 = vmatpush2.msra.mxu0 0.0
        %605 = vmatprep.subr.mxu0 0.0
        %606 = vmatpush2.msra.mxu0 0.0
        %607 = vmatprep.subr.mxu0 0.0
        %608 = vmatpush2.msra.mxu0 0.0
        %609 = vmatprep.subr.mxu0 0.0
        %610 = vmatpush2.msra.mxu0 0.0
        %611 = vmatprep.subr.mxu0 0.0
        %612 = vmatpush2.msra.mxu0 0.0
        %613 = vmatprep.subr.mxu0 0.0
        %614 = vmatpush2.msra.mxu0 0.0
        %615 = vmatprep.mubr.f32.mxu0 0.0
        %v616 = vand.u32 %v260, 4294901760
        %v617 = vsub.f32 %v260, %v616
        %618 = vmatmul.mubr.f32.gmra.mxu0 %v617
        %v619 = vpop.f32.mrf.mxu0
        %v620 = vadd.f32 %v516, %v619
        %v621 = vpop.f32.mrf.mxu0
        %622 = vdwg.mxu0
        %623 = vmatprep.subr.mxu0 0.0
        %v624 = vand.u32 %v276, 4294901760
        %625 = vmatpush1.msra.mxu0 %v624
        %626 = vmatprep.subr.mxu0 0.0
        %v627 = vand.u32 %v275, 4294901760
        %628 = vmatpush1.msra.mxu0 %v627
        %629 = vmatprep.subr.mxu0 0.0
        %v630 = vand.u32 %v274, 4294901760
        %631 = vmatpush1.msra.mxu0 %v630
        %632 = vmatprep.subr.mxu0 0.0
        %v633 = vand.u32 %v273, 4294901760
        %634 = vmatpush1.msra.mxu0 %v633
        %635 = vmatprep.subr.mxu0 0.0
        %v636 = vand.u32 %v272, 4294901760
        %637 = vmatpush1.msra.mxu0 %v636
        %638 = vmatprep.subr.mxu0 0.0
        %v639 = vand.u32 %v271, 4294901760
        %640 = vmatpush1.msra.mxu0 %v639
        %641 = vmatprep.subr.mxu0 0.0
        %v642 = vand.u32 %v270, 4294901760
        %643 = vmatpush1.msra.mxu0 %v642
        %644 = vmatprep.subr.mxu0 0.0
        %v645 = vand.u32 %v269, 4294901760
        %646 = vmatpush1.msra.mxu0 %v645
        %647 = vmatprep.subr.mxu0 0.0
        %v648 = vand.u32 %v268, 4294901760
        %649 = vmatpush1.msra.mxu0 %v648
        %650 = vmatprep.subr.mxu0 0.0
        %v651 = vand.u32 %v267, 4294901760
        %652 = vmatpush1.msra.mxu0 %v651
        %653 = vmatprep.subr.mxu0 0.0
        %v654 = vand.u32 %v266, 4294901760
        %655 = vmatpush1.msra.mxu0 %v654
        %656 = vmatprep.subr.mxu0 0.0
        %v657 = vand.u32 %v265, 4294901760
        %658 = vmatpush1.msra.mxu0 %v657
        %659 = vmatprep.subr.mxu0 0.0
        %v660 = vand.u32 %v264, 4294901760
        %661 = vmatpush1.msra.mxu0 %v660
        %662 = vmatprep.subr.mxu0 0.0
        %v663 = vand.u32 %v263, 4294901760
        %664 = vmatpush1.msra.mxu0 %v663
        %665 = vmatprep.subr.mxu0 0.0
        %v666 = vand.u32 %v262, 4294901760
        %667 = vmatpush1.msra.mxu0 %v666
        %668 = vmatprep.subr.mxu0 0.0
        %v669 = vand.u32 %v261, 4294901760
        %670 = vmatpush1.msra.mxu0 %v669
        %671 = vmatprep.subr.mxu0 0.0
        %672 = vmatpush2.msra.mxu0 0.0
        %673 = vmatprep.subr.mxu0 0.0
        %674 = vmatpush2.msra.mxu0 0.0
        %675 = vmatprep.subr.mxu0 0.0
        %676 = vmatpush2.msra.mxu0 0.0
        %677 = vmatprep.subr.mxu0 0.0
        %678 = vmatpush2.msra.mxu0 0.0
        %679 = vmatprep.subr.mxu0 0.0
        %680 = vmatpush2.msra.mxu0 0.0
        %681 = vmatprep.subr.mxu0 0.0
        %682 = vmatpush2.msra.mxu0 0.0
        %683 = vmatprep.subr.mxu0 0.0
        %684 = vmatpush2.msra.mxu0 0.0
        %685 = vmatprep.subr.mxu0 0.0
        %686 = vmatpush2.msra.mxu0 0.0
        %687 = vmatprep.subr.mxu0 0.0
        %688 = vmatpush2.msra.mxu0 0.0
        %689 = vmatprep.subr.mxu0 0.0
        %690 = vmatpush2.msra.mxu0 0.0
        %691 = vmatprep.subr.mxu0 0.0
        %692 = vmatpush2.msra.mxu0 0.0
        %693 = vmatprep.subr.mxu0 0.0
        %694 = vmatpush2.msra.mxu0 0.0
        %695 = vmatprep.subr.mxu0 0.0
        %696 = vmatpush2.msra.mxu0 0.0
        %697 = vmatprep.subr.mxu0 0.0
        %698 = vmatpush2.msra.mxu0 0.0
        %699 = vmatprep.subr.mxu0 0.0
        %700 = vmatpush2.msra.mxu0 0.0
        %701 = vmatprep.subr.mxu0 0.0
        %702 = vmatpush2.msra.mxu0 0.0
        %703 = vmatprep.mubr.f32.mxu0 0.0
        %v704 = vand.u32 %v260, 4294901760
        %v705 = vsub.f32 %v260, %v704
        %v706 = vand.u32 %v705, 4294901760
        %707 = vmatmul.mubr.f32.gmra.mxu0 %v706
        %v708 = vpop.f32.mrf.mxu0
        %v709 = vadd.f32 %v620, %v708
        %v710 = vpop.f32.mrf.mxu0
        %711 = vdwg.mxu0
        %712 = vmatprep.subr.mxu0 0.0
        %v713 = vand.u32 %v276, 4294901760
        %v714 = vsub.f32 %v276, %v713
        %v715 = vand.u32 %v714, 4294901760
        %716 = vmatpush1.msra.mxu0 %v715
        %717 = vmatprep.subr.mxu0 0.0
        %v718 = vand.u32 %v275, 4294901760
        %v719 = vsub.f32 %v275, %v718
        %v720 = vand.u32 %v719, 4294901760
        %721 = vmatpush1.msra.mxu0 %v720
        %722 = vmatprep.subr.mxu0 0.0
        %v723 = vand.u32 %v274, 4294901760
        %v724 = vsub.f32 %v274, %v723
        %v725 = vand.u32 %v724, 4294901760
        %726 = vmatpush1.msra.mxu0 %v725
        %727 = vmatprep.subr.mxu0 0.0
        %v728 = vand.u32 %v273, 4294901760
        %v729 = vsub.f32 %v273, %v728
        %v730 = vand.u32 %v729, 4294901760
        %731 = vmatpush1.msra.mxu0 %v730
        %732 = vmatprep.subr.mxu0 0.0
        %v733 = vand.u32 %v272, 4294901760
        %v734 = vsub.f32 %v272, %v733
        %v735 = vand.u32 %v734, 4294901760
        %736 = vmatpush1.msra.mxu0 %v735
        %737 = vmatprep.subr.mxu0 0.0
        %v738 = vand.u32 %v271, 4294901760
        %v739 = vsub.f32 %v271, %v738
        %v740 = vand.u32 %v739, 4294901760
        %741 = vmatpush1.msra.mxu0 %v740
        %742 = vmatprep.subr.mxu0 0.0
        %v743 = vand.u32 %v270, 4294901760
        %v744 = vsub.f32 %v270, %v743
        %v745 = vand.u32 %v744, 4294901760
        %746 = vmatpush1.msra.mxu0 %v745
        %747 = vmatprep.subr.mxu0 0.0
        %v748 = vand.u32 %v269, 4294901760
        %v749 = vsub.f32 %v269, %v748
        %v750 = vand.u32 %v749, 4294901760
        %751 = vmatpush1.msra.mxu0 %v750
        %752 = vmatprep.subr.mxu0 0.0
        %v753 = vand.u32 %v268, 4294901760
        %v754 = vsub.f32 %v268, %v753
        %v755 = vand.u32 %v754, 4294901760
        %756 = vmatpush1.msra.mxu0 %v755
        %757 = vmatprep.subr.mxu0 0.0
        %v758 = vand.u32 %v267, 4294901760
        %v759 = vsub.f32 %v267, %v758
        %v760 = vand.u32 %v759, 4294901760
        %761 = vmatpush1.msra.mxu0 %v760
        %762 = vmatprep.subr.mxu0 0.0
        %v763 = vand.u32 %v266, 4294901760
        %v764 = vsub.f32 %v266, %v763
        %v765 = vand.u32 %v764, 4294901760
        %766 = vmatpush1.msra.mxu0 %v765
        %767 = vmatprep.subr.mxu0 0.0
        %v768 = vand.u32 %v265, 4294901760
        %v769 = vsub.f32 %v265, %v768
        %v770 = vand.u32 %v769, 4294901760
        %771 = vmatpush1.msra.mxu0 %v770
        %772 = vmatprep.subr.mxu0 0.0
        %v773 = vand.u32 %v264, 4294901760
        %v774 = vsub.f32 %v264, %v773
        %v775 = vand.u32 %v774, 4294901760
        %776 = vmatpush1.msra.mxu0 %v775
        %777 = vmatprep.subr.mxu0 0.0
        %v778 = vand.u32 %v263, 4294901760
        %v779 = vsub.f32 %v263, %v778
        %v780 = vand.u32 %v779, 4294901760
        %781 = vmatpush1.msra.mxu0 %v780
        %782 = vmatprep.subr.mxu0 0.0
        %v783 = vand.u32 %v262, 4294901760
        %v784 = vsub.f32 %v262, %v783
        %v785 = vand.u32 %v784, 4294901760
        %786 = vmatpush1.msra.mxu0 %v785
        %787 = vmatprep.subr.mxu0 0.0
        %v788 = vand.u32 %v261, 4294901760
        %v789 = vsub.f32 %v261, %v788
        %v790 = vand.u32 %v789, 4294901760
        %791 = vmatpush1.msra.mxu0 %v790
        %792 = vmatprep.subr.mxu0 0.0
        %793 = vmatpush2.msra.mxu0 0.0
        %794 = vmatprep.subr.mxu0 0.0
        %795 = vmatpush2.msra.mxu0 0.0
        %796 = vmatprep.subr.mxu0 0.0
        %797 = vmatpush2.msra.mxu0 0.0
        %798 = vmatprep.subr.mxu0 0.0
        %799 = vmatpush2.msra.mxu0 0.0
        %800 = vmatprep.subr.mxu0 0.0
        %801 = vmatpush2.msra.mxu0 0.0
        %802 = vmatprep.subr.mxu0 0.0
        %803 = vmatpush2.msra.mxu0 0.0
        %804 = vmatprep.subr.mxu0 0.0
        %805 = vmatpush2.msra.mxu0 0.0
        %806 = vmatprep.subr.mxu0 0.0
        %807 = vmatpush2.msra.mxu0 0.0
        %808 = vmatprep.subr.mxu0 0.0
        %809 = vmatpush2.msra.mxu0 0.0
        %810 = vmatprep.subr.mxu0 0.0
        %811 = vmatpush2.msra.mxu0 0.0
        %812 = vmatprep.subr.mxu0 0.0
        %813 = vmatpush2.msra.mxu0 0.0
        %814 = vmatprep.subr.mxu0 0.0
        %815 = vmatpush2.msra.mxu0 0.0
        %816 = vmatprep.subr.mxu0 0.0
        %817 = vmatpush2.msra.mxu0 0.0
        %818 = vmatprep.subr.mxu0 0.0
        %819 = vmatpush2.msra.mxu0 0.0
        %820 = vmatprep.subr.mxu0 0.0
        %821 = vmatpush2.msra.mxu0 0.0
        %822 = vmatprep.subr.mxu0 0.0
        %823 = vmatpush2.msra.mxu0 0.0
        %824 = vmatprep.mubr.f32.mxu0 0.0
        %v825 = vand.u32 %v260, 4294901760
        %826 = vmatmul.mubr.f32.gmra.mxu0 %v825
        %v827 = vpop.f32.mrf.mxu0
        %v828 = vadd.f32 %v709, %v827
        %v829 = vpop.f32.mrf.mxu0
        %830 = vdwg.mxu0
        %831 = vmatprep.subr.mxu0 0.0
        %v832 = vand.u32 %v276, 4294901760
        %833 = vmatpush1.msra.mxu0 %v832
        %834 = vmatprep.subr.mxu0 0.0
        %v835 = vand.u32 %v275, 4294901760
        %836 = vmatpush1.msra.mxu0 %v835
        %837 = vmatprep.subr.mxu0 0.0
        %v838 = vand.u32 %v274, 4294901760
        %839 = vmatpush1.msra.mxu0 %v838
        %840 = vmatprep.subr.mxu0 0.0
        %v841 = vand.u32 %v273, 4294901760
        %842 = vmatpush1.msra.mxu0 %v841
        %843 = vmatprep.subr.mxu0 0.0
        %v844 = vand.u32 %v272, 4294901760
        %845 = vmatpush1.msra.mxu0 %v844
        %846 = vmatprep.subr.mxu0 0.0
        %v847 = vand.u32 %v271, 4294901760
        %848 = vmatpush1.msra.mxu0 %v847
        %849 = vmatprep.subr.mxu0 0.0
        %v850 = vand.u32 %v270, 4294901760
        %851 = vmatpush1.msra.mxu0 %v850
        %852 = vmatprep.subr.mxu0 0.0
        %v853 = vand.u32 %v269, 4294901760
        %854 = vmatpush1.msra.mxu0 %v853
        %855 = vmatprep.subr.mxu0 0.0
        %v856 = vand.u32 %v268, 4294901760
        %857 = vmatpush1.msra.mxu0 %v856
        %858 = vmatprep.subr.mxu0 0.0
        %v859 = vand.u32 %v267, 4294901760
        %860 = vmatpush1.msra.mxu0 %v859
        %861 = vmatprep.subr.mxu0 0.0
        %v862 = vand.u32 %v266, 4294901760
        %863 = vmatpush1.msra.mxu0 %v862
        %864 = vmatprep.subr.mxu0 0.0
        %v865 = vand.u32 %v265, 4294901760
        %866 = vmatpush1.msra.mxu0 %v865
        %867 = vmatprep.subr.mxu0 0.0
        %v868 = vand.u32 %v264, 4294901760
        %869 = vmatpush1.msra.mxu0 %v868
        %870 = vmatprep.subr.mxu0 0.0
        %v871 = vand.u32 %v263, 4294901760
        %872 = vmatpush1.msra.mxu0 %v871
        %873 = vmatprep.subr.mxu0 0.0
        %v874 = vand.u32 %v262, 4294901760
        %875 = vmatpush1.msra.mxu0 %v874
        %876 = vmatprep.subr.mxu0 0.0
        %v877 = vand.u32 %v261, 4294901760
        %878 = vmatpush1.msra.mxu0 %v877
        %879 = vmatprep.subr.mxu0 0.0
        %880 = vmatpush2.msra.mxu0 0.0
        %881 = vmatprep.subr.mxu0 0.0
        %882 = vmatpush2.msra.mxu0 0.0
        %883 = vmatprep.subr.mxu0 0.0
        %884 = vmatpush2.msra.mxu0 0.0
        %885 = vmatprep.subr.mxu0 0.0
        %886 = vmatpush2.msra.mxu0 0.0
        %887 = vmatprep.subr.mxu0 0.0
        %888 = vmatpush2.msra.mxu0 0.0
        %889 = vmatprep.subr.mxu0 0.0
        %890 = vmatpush2.msra.mxu0 0.0
        %891 = vmatprep.subr.mxu0 0.0
        %892 = vmatpush2.msra.mxu0 0.0
        %893 = vmatprep.subr.mxu0 0.0
        %894 = vmatpush2.msra.mxu0 0.0
        %895 = vmatprep.subr.mxu0 0.0
        %896 = vmatpush2.msra.mxu0 0.0
        %897 = vmatprep.subr.mxu0 0.0
        %898 = vmatpush2.msra.mxu0 0.0
        %899 = vmatprep.subr.mxu0 0.0
        %900 = vmatpush2.msra.mxu0 0.0
        %901 = vmatprep.subr.mxu0 0.0
        %902 = vmatpush2.msra.mxu0 0.0
        %903 = vmatprep.subr.mxu0 0.0
        %904 = vmatpush2.msra.mxu0 0.0
        %905 = vmatprep.subr.mxu0 0.0
        %906 = vmatpush2.msra.mxu0 0.0
        %907 = vmatprep.subr.mxu0 0.0
        %908 = vmatpush2.msra.mxu0 0.0
        %909 = vmatprep.subr.mxu0 0.0
        %910 = vmatpush2.msra.mxu0 0.0
        %911 = vmatprep.mubr.f32.mxu0 0.0
        %v912 = vand.u32 %v260, 4294901760
        %913 = vmatmul.mubr.f32.gmra.mxu0 %v912
        %v914 = vpop.f32.mrf.mxu0
        %v915 = vadd.f32 %v828, %v914
        %v916 = vpop.f32.mrf.mxu0
        %917 = vdwg.mxu0
        %v918 = vld [vmem:[%s256] sm:$0xff]
        %v919 = vmul.f32 %v918, 0.5
        %921 = vset.pattern.permute.xlu0 0
        %922 = vperm.xlu0 %921, %v919
        %v923 = vpop.permute.xlu0 %922
        %v925 = vmul.f32 %v915, %v923
        %v926 = vld [vmem:[%s259] sm:$0x1]
        %v928 = vlaneseq
        %v929 = vshrl.u32 %v928, 7
        %v930 = vsub.s32 0, %v929
        %v931 = vrot.slane %v926, %v930
        %v933 = vmul.f32 %v925, %v931
        %v934 = vadd.f32 %v933, 0.5
        %935 = vst [vmem:[%s248] sm:$0xff] %v934
        %s936 = sand.u32 %s145, 1
        %s937 = scalar_lea.sflag [#allocation4], %s936
        %s938 = sand.u32 %s145, 1
        %s939 = smul.addr %s938, 8
        %s940 = scalar_lea.vmem [#allocation5], %s939
        // Predicated region
        $region41: #{tpu_custom_call.1} parent=35 // pred_check
          %p941 = pneg %p155
        $region42: #{tpu_custom_call.1} parent=35 // pred_check_branch
          %943 = sbr.rel (%p941) target = $region44
        $region43: #{tpu_custom_call.1} parent=35 // pred_region
          %s945 = ssub.s32 128, 128
          %946 = vsyncadd %s937, %s945
          %s947 = sadd.s32 %s24, %s23
          %s948 = smul.addr %s947, 128
          %s949 = scalar_lea.hbm %s4, %s948
          %s951 = sshll.u32 %s940, 4
          %s952 = int_to_ptr.vmem [resolvable:$true] %s951
          %954 = dma.vmem_to_hbm [thread:$0]  %s952, 128, %s949, %s937
        $region44: #{tpu_custom_call.1} parent=35 // pred_fallthru
          _
      $region36: #{tpu_custom_call.1} parent=5 // pred_fallthru
        _
      %p955 = scmp.le.s32.totalorder 2, %s14
      // Predicated region
      $region45: #{tpu_custom_call.1} parent=5 // pred_check
        %p956 = pneg %p955
      $region46: #{tpu_custom_call.1} parent=5 // pred_check_branch
        %958 = sbr.rel (%p956) target = $region48
      $region47: #{tpu_custom_call.1} parent=5 // pred_region
        %s959 = ssub.s32 %s14, 2
        // Predicated region
        $region49: #{tpu_custom_call.1} parent=47 // pred_check
          %p960 = pneg %p161
        $region50: #{tpu_custom_call.1} parent=47 // pred_check_branch
          %962 = sbr.rel (%p960) target = $region52
        $region51: #{tpu_custom_call.1} parent=47 // pred_region
          %s963 = sand.u32 %s146, 1
          %s964 = scalar_lea.sflag [#allocation4], %s963
          %s965 = sand.u32 %s146, 1
          %s966 = smul.addr %s965, 8
          %s967 = scalar_lea.vmem [#allocation5], %s966
          %968 = dma.done %s964, 128
        $region52: #{tpu_custom_call.1} parent=47 // pred_fallthru
          _
      $region48: #{tpu_custom_call.1} parent=5 // pred_fallthru
        _
    $region6: #{tpu_custom_call.1} parent=1 // loop_footer
      %s18 = sadd.s32 1, %s14
    $region7: #{tpu_custom_call.1} parent=1 // loop_footer_branch
      %13 = sbr.rel target = $region3
    $region8: #{tpu_custom_call.1} parent=1 // loop_exit
      _
    %969 = vsyncpa [#allocation3], 1
    %s970 = scalar_lea.sflag [#allocation3], 1
    %971 = vsyncpa %s970, 1
    %972 = vsyncpa [#allocation4], 1
    %s973 = scalar_lea.sflag [#allocation4], 1
    %974 = vsyncpa %s973, 1

</llo_original>
